<compile_context>
chip_gen: v6e
topology: v6e:2x2x1
jax: 0.10.0
libtpu: 0.0.40
codegen_flags: <defaults>
</compile_context>

<pallas_src>
import functools

import jax
import jax.numpy as jnp
from jax import lax
from jax.experimental import pallas as pl
from jax.experimental.pallas import tpu as pltpu


def _round_up(x, m):
    return (x + m - 1) // m * m


def _linear_kernel_f32(x_ref, w_ref, b_ref, o_ref):
    """f32 output: accumulate directly into the resident output block."""
    k = pl.program_id(2)

    @pl.when(k == 0)
    def _():
        o_ref[...] = jnp.zeros_like(o_ref)

    # x:(tm,tk) contracted with weight:(tn,tk) along K (NT matmul) -> (tm,tn).
    # Keeps the PyTorch (N, K) weight layout; no HBM transpose in the wrapper.
    o_ref[...] += lax.dot_general(
        x_ref[...],
        w_ref[...],
        dimension_numbers=(((1,), (1,)), ((), ())),
        preferred_element_type=jnp.float32,
    )

    @pl.when(k == pl.num_programs(2) - 1)
    def _():
        # Fused bias add on the final reduction step ((1, tn) broadcasts).
        o_ref[...] += b_ref[...].astype(jnp.float32)


def _linear_kernel_acc(x_ref, w_ref, b_ref, o_ref, acc_ref):
    """Low-precision output: f32 scratch accumulator, fused bias + downcast."""
    k = pl.program_id(2)

    @pl.when(k == 0)
    def _():
        acc_ref[...] = jnp.zeros_like(acc_ref)

    acc_ref[...] += lax.dot_general(
        x_ref[...],
        w_ref[...],
        dimension_numbers=(((1,), (1,)), ((), ())),
        preferred_element_type=jnp.float32,
    )

    @pl.when(k == pl.num_programs(2) - 1)
    def _():
        o_ref[...] = (acc_ref[...] + b_ref[...].astype(jnp.float32)).astype(
            o_ref.dtype
        )


@functools.partial(jax.jit, static_argnames=("tm", "tn", "tk"))
def pallas_linear(x, weight, bias, *, tm=256, tn=512, tk=512):
    """Equivalent of torch.nn.Linear: y = x @ weight.T + bias.

    x: (..., K); weight: (N, K) (PyTorch layout); bias: (N,). Returns (..., N).
    """
    out_dtype = x.dtype
    *lead, K = x.shape
    N, K_w = weight.shape
    assert K == K_w, (K, K_w)
    M = 1
    for d in lead:
        M *= d
    x2 = x.reshape(M, K)

    # ---- Tile-size selection -------------------------------------------
    # Full-extent blocks are always layout-legal; otherwise tm/tn stay at
    # their (8,128)-aligned defaults and edge tiles are partial (no padding:
    # matmul rows/cols are independent, so garbage never reaches valid
    # output elements).
    if M <= tm:
        tm = M
    if N <= tn:
        tn = N
    if K <= tk:
        tk = K          # single reduction step, full-extent K block, no pad
    K_pad = _round_up(K, tk)

    # Keep both v7x TensorCores busy: avoid a (1,1) parallel grid extent for
    # non-tiny problems by shrinking tn (then tm) before collapsing.
    for _ in range(8):
        if pl.cdiv(M, tm) * pl.cdiv(N, tn) >= 2 or tm * tn < 2 * 128 * 128:
            break
        if tn > 128:
            tn = _round_up(tn // 2, 128)
        else:
            tm = max(8, _round_up(tm // 2, 8))

    # K padding (zeros contribute nothing to the dot) only in the uncommon
    # K % tk != 0 case.
    if K_pad != K:
        x2 = jnp.pad(x2, ((0, 0), (0, K_pad - K)))
        w = jnp.pad(weight, ((0, 0), (0, K_pad - K)))
    else:
        w = weight
    b2 = bias.reshape(1, N)

    grid = (pl.cdiv(M, tm), pl.cdiv(N, tn), K_pad // tk)

    use_scratch = jnp.dtype(out_dtype) != jnp.dtype(jnp.float32)
    kernel = _linear_kernel_acc if use_scratch else _linear_kernel_f32
    scratch_shapes = [pltpu.VMEM((tm, tn), jnp.float32)] if use_scratch else []

    # ---- VMEM budget derived from the actual tile footprint --------------
    x_bytes = x2.dtype.itemsize
    w_bytes = w.dtype.itemsize
    b_bytes = b2.dtype.itemsize
    o_bytes = jnp.dtype(out_dtype).itemsize
    vmem_needed = (
        2 * tm * tk * x_bytes          # x tiles, double-buffered
        + 2 * tn * tk * w_bytes        # weight tiles, double-buffered
        + 2 * tn * b_bytes             # bias tiles, double-buffered
        + 2 * tm * tn * o_bytes        # output tiles, double-buffered
        + (tm * tn * 4 if use_scratch else 0)
    )
    # Headroom for compiler-internal scratch; capped well under v7x's 64 MiB.
    vmem_limit = min(max(2 * vmem_needed, 16 * 1024 * 1024), 48 * 1024 * 1024)

    cost = pl.CostEstimate(
        flops=2 * M * N * K,
        transcendentals=0,
        bytes_accessed=(
            M * K * x_bytes + N * K * w_bytes + N * b_bytes + M * N * o_bytes
        ),
    )

    out = pl.pallas_call(
        kernel,
        out_shape=jax.ShapeDtypeStruct((M, N), out_dtype),
        grid_spec=pltpu.PrefetchScalarGridSpec(
            num_scalar_prefetch=0,
            grid=grid,
            in_specs=[
                pl.BlockSpec((tm, tk), lambda i, j, k: (i, k)),  # x tile
                pl.BlockSpec((tn, tk), lambda i, j, k: (j, k)),  # weight (N,K) tile
                pl.BlockSpec((1, tn), lambda i, j, k: (0, j)),   # bias tile
            ],
            out_specs=pl.BlockSpec((tm, tn), lambda i, j, k: (i, j)),
            scratch_shapes=scratch_shapes,
        ),
        compiler_params=pltpu.CompilerParams(
            # M/N tiles are independent (megacore-shardable); K is the reduction.
            dimension_semantics=("parallel", "parallel", "arbitrary"),
            vmem_limit_bytes=vmem_limit,
        ),
        cost_estimate=cost,
    )(x2, w, b2)

    return out.reshape(*lead, N)


if __name__ == "__main__":
    key = jax.random.PRNGKey(0)
    k_x, k_w, k_b = jax.random.split(key, 3)

    # Small shapes consistent with the module: batch=2, seq=8, hidden 32 -> 64.
    batch, seq, input_dim, output_dim = 2, 8, 32, 64
    x = jax.random.normal(k_x, (batch, seq, input_dim), dtype=jnp.float32)

    # Xavier-uniform weight / zero bias, matching the module's init.
    limit = (6.0 / (input_dim + output_dim)) ** 0.5
    weight = jax.random.uniform(
        k_w, (output_dim, input_dim), minval=-limit, maxval=limit,
        dtype=jnp.float32,
    )
    bias = jnp.zeros((output_dim,), dtype=jnp.float32)

    out = pallas_linear(x, weight, bias)
    out = jax.block_until_ready(out)
    ref = x @ weight.T + bias
    assert out.shape == ref.shape, (out.shape, ref.shape)
    assert out.dtype == ref.dtype, (out.dtype, ref.dtype)
    assert bool(jnp.allclose(out, ref, atol=1e-5, rtol=1e-5)), float(
        jnp.max(jnp.abs(out - ref))
    )

    # Second run with a non-zero bias to exercise the fused bias-add path.
    bias2 = jax.random.normal(k_b, (output_dim,), dtype=jnp.float32)
    out2 = jax.block_until_ready(pallas_linear(x, weight, bias2))
    ref2 = x @ weight.T + bias2
    assert bool(jnp.allclose(out2, ref2, atol=1e-5, rtol=1e-5)), float(
        jnp.max(jnp.abs(out2 - ref2))
    )

    # Third run exercising the low-precision (scratch-accumulator) path and a
    # K that needs no padding with multi-step reduction tiling.
    xb = jax.random.normal(k_x, (4, 1024), dtype=jnp.bfloat16)
    wb = jax.random.normal(k_w, (256, 1024), dtype=jnp.bfloat16) * 0.02
    bb = jax.random.normal(k_b, (256,), dtype=jnp.bfloat16)
    out3 = jax.block_until_ready(pallas_linear(xb, wb, bb))
    ref3 = (xb.astype(jnp.float32) @ wb.astype(jnp.float32).T
            + bb.astype(jnp.float32)).astype(jnp.bfloat16)
    assert out3.shape == ref3.shape and out3.dtype == ref3.dtype
    assert bool(jnp.allclose(out3.astype(jnp.float32), ref3.astype(jnp.float32),
                             atol=3e-2, rtol=3e-2))

    print("KERNEL_OK")
</pallas_src>

<mosaic_0001>
module attributes {stable_mosaic.version = 11 : i64} {
  func.func @_linear_kernel_f32(%arg0: i32, %arg1: i32, %arg2: i32, %arg3: memref<16x32xf32, #tpu.memory_space<vmem>>, %arg4: memref<64x32xf32, #tpu.memory_space<vmem>>, %arg5: memref<1x64xf32, #tpu.memory_space<vmem>>, %arg6: memref<16x64xf32, #tpu.memory_space<vmem>>) attributes {dimension_semantics = [#tpu.dimension_semantics<parallel>, #tpu.dimension_semantics<parallel>, #tpu.dimension_semantics<arbitrary>], iteration_bounds = array<i64: 1, 1, 1>, scalar_prefetch = 0 : i64, scratch_operands = 0 : i64, tpu.core_type = #tpu.core_type<tc>, window_params = [{transform_indices = @transform_0, window_bounds = array<i64: 16, 32>}, {transform_indices = @transform_1, window_bounds = array<i64: 64, 32>}, {transform_indices = @transform_2, window_bounds = array<i64: 1, 64>}, {transform_indices = @transform_3, window_bounds = array<i64: 16, 64>}]} {
    %c0_i32 = arith.constant 0 : i32
    %0 = arith.cmpi eq, %arg2, %c0_i32 : i32
    %1 = arith.extui %0 : i1 to i32
    %c0_i32_0 = arith.constant 0 : i32
    %2 = arith.cmpi ne, %1, %c0_i32_0 : i32
    scf.if %2 {
      %cst_10 = arith.constant 0.000000e+00 : f32
      %12 = vector.broadcast %cst_10 : f32 to vector<16x64xf32>
      %c0_11 = arith.constant 0 : index
      %c0_12 = arith.constant 0 : index
      %13 = vector.load %arg6[%c0_11, %c0_12] : memref<16x64xf32, #tpu.memory_space<vmem>>, vector<16x64xf32>
      tpu.vector_store %arg6[%c0_11, %c0_12], %12 {strides = array<i32>} : memref<16x64xf32, #tpu.memory_space<vmem>>, vector<16x64xf32>,
    } else {
    }
    %c0 = arith.constant 0 : index
    %c0_1 = arith.constant 0 : index
    %3 = vector.load %arg6[%c0, %c0_1] : memref<16x64xf32, #tpu.memory_space<vmem>>, vector<16x64xf32>
    %c0_2 = arith.constant 0 : index
    %c0_3 = arith.constant 0 : index
    %4 = vector.load %arg3[%c0_2, %c0_3] : memref<16x32xf32, #tpu.memory_space<vmem>>, vector<16x32xf32>
    %c0_4 = arith.constant 0 : index
    %c0_5 = arith.constant 0 : index
    %5 = vector.load %arg4[%c0_4, %c0_5] : memref<64x32xf32, #tpu.memory_space<vmem>>, vector<64x32xf32>
    %cst = arith.constant dense<0.000000e+00> : vector<16x64xf32>
    %6 = tpu.matmul %4, %5, %cst {dimension_numbers = #tpu.dot_dimension_numbers<[1], [1], [0], [0], [0, 0, 1, 0], [], []>} : vector<16x32xf32>, vector<64x32xf32>, vector<16x64xf32> -> vector<16x64xf32>
    %7 = arith.addf %3, %6 : vector<16x64xf32>
    %c0_6 = arith.constant 0 : index
    %c0_7 = arith.constant 0 : index
    %8 = vector.load %arg6[%c0_6, %c0_7] : memref<16x64xf32, #tpu.memory_space<vmem>>, vector<16x64xf32>
    tpu.vector_store %arg6[%c0_6, %c0_7], %7 {strides = array<i32>} : memref<16x64xf32, #tpu.memory_space<vmem>>, vector<16x64xf32>,
    %c0_i32_8 = arith.constant 0 : i32
    %9 = arith.cmpi eq, %arg2, %c0_i32_8 : i32
    %10 = arith.extui %9 : i1 to i32
    %c0_i32_9 = arith.constant 0 : i32
    %11 = arith.cmpi ne, %10, %c0_i32_9 : i32
    scf.if %11 {
      %c0_10 = arith.constant 0 : index
      %c0_11 = arith.constant 0 : index
      %12 = vector.load %arg6[%c0_10, %c0_11] : memref<16x64xf32, #tpu.memory_space<vmem>>, vector<16x64xf32>
      %c0_12 = arith.constant 0 : index
      %c0_13 = arith.constant 0 : index
      %13 = vector.load %arg5[%c0_12, %c0_13] : memref<1x64xf32, #tpu.memory_space<vmem>>, vector<1x64xf32>
      %14 = vector.broadcast %13 : vector<1x64xf32> to vector<16x64xf32>
      %15 = arith.addf %12, %14 : vector<16x64xf32>
      %c0_14 = arith.constant 0 : index
      %c0_15 = arith.constant 0 : index
      %16 = vector.load %arg6[%c0_14, %c0_15] : memref<16x64xf32, #tpu.memory_space<vmem>>, vector<16x64xf32>
      tpu.vector_store %arg6[%c0_14, %c0_15], %15 {strides = array<i32>} : memref<16x64xf32, #tpu.memory_space<vmem>>, vector<16x64xf32>,
    } else {
    }
    return
  }
  func.func @transform_0(%arg0: i32, %arg1: i32, %arg2: i32) -> (i32, i32) {
    %c0_i32 = arith.constant 0 : i32
    return %arg0, %arg2 : i32, i32
  }
  func.func @transform_1(%arg0: i32, %arg1: i32, %arg2: i32) -> (i32, i32) {
    %c0_i32 = arith.constant 0 : i32
    return %arg1, %arg2 : i32, i32
  }
  func.func @transform_2(%arg0: i32, %arg1: i32, %arg2: i32) -> (i32, i32) {
    %c0_i32 = arith.constant 0 : i32
    %c0_i32_0 = arith.constant 0 : i32
    return %c0_i32, %arg1 : i32, i32
  }
  func.func @transform_3(%arg0: i32, %arg1: i32, %arg2: i32) -> (i32, i32) {
    %c0_i32 = arith.constant 0 : i32
    return %arg0, %arg1 : i32, i32
  }
}

</mosaic_0001>

<llo_original>
// kernel: pallas_linear.1
$region0: #{pallas_linear.1}
  #allocation0 [shape = 'u32[]', space=smem, size = 0x4, offset = 0x4, fixed_abs, tag = 'smem constant byte address 0x4 - core index']
  #allocation1 [shape = 'u32[144,128]{1,0:T(1,128)}', space=vmem, size = 0x12000, scoped, tag = 'internal scratch']
  %s0 = inlined_call_operand.vmem [shape: f32[16,32], index: 0, kind: input, shape index: {}]
  %s1 = inlined_call_operand.vmem [shape: f32[64,32], index: 1, kind: input, shape index: {}]
  %s2 = inlined_call_operand.vmem [shape: f32[1,64], index: 2, kind: input, shape index: {}]
  %s3 = inlined_call_operand.hbm [shape: f32[16,64], index: 3, kind: output, shape index: {}]
  %s4 = sld [smem:[#allocation0]]
  $region30: #{pallas_linear.1} parent=0
    _
  %s6 = ssub.s32 1, %s4
  %s7 = scalar_select 0, %s6, %s4
  $region1: #{pallas_linear.1} parent=0
    #allocation2 [shape = 'u8[8192]{0}', space=vmem, size = 0x2000, scoped, tag = 'output window, operand 0, single buffered']
    #allocation3 [shape = 's32[1]{0}', space=sflag, size = 0x4, scoped, tag = 'scoped memory for pallas_linear.1']
    %8 = vsyncpa [#allocation3], 0
    // Predicated region
    $region2: #{pallas_linear.1} parent=1 // pred_check
      _
    $region3: #{pallas_linear.1} parent=1 // pred_check_branch
      %10 = sbr.rel (0) target = $region5
    $region4: #{pallas_linear.1} parent=1 // pred_region
      _
    $region5: #{pallas_linear.1} parent=1 // pred_fallthru
      _
    // Predicated region
    $region6: #{pallas_linear.1} parent=1 // pred_check
      _
    $region7: #{pallas_linear.1} parent=1 // pred_check_branch
      %12 = sbr.rel (0) target = $region9
    $region8: #{pallas_linear.1} parent=1 // pred_region
      _
    $region9: #{pallas_linear.1} parent=1 // pred_fallthru
      _
    // Predicated region
    $region10: #{pallas_linear.1} parent=1 // pred_check
      _
    $region11: #{pallas_linear.1} parent=1 // pred_check_branch
      %14 = sbr.rel (0) target = $region13
    $region12: #{pallas_linear.1} parent=1 // pred_region
      _
    $region13: #{pallas_linear.1} parent=1 // pred_fallthru
      _
    %p15 = scmp.eq.s32.totalorder 0, 0
    // Predicated region
    $region14: #{pallas_linear.1} parent=1 // pred_check
      %p16 = pneg %p15
    $region15: #{pallas_linear.1} parent=1 // pred_check_branch
      %18 = sbr.rel (%p16) target = $region17
    $region16: #{pallas_linear.1} parent=1 // pred_region
      %vm19 = vcmask 523264
      %20 = vst.msk [vmem:[#allocation2] sm:$0xff] %vm19, 0.0
      %21 = vst.msk [vmem:[#allocation2 + $0x8] sm:$0xff] %vm19, 0.0
    $region17: #{pallas_linear.1} parent=1 // pred_fallthru
      _
    %v22 = vld [vmem:[#allocation2] sm:$0xff]
    %v23 = vld [vmem:[#allocation2 + $0x8] sm:$0xff]
    %v24 = vld [vmem:[%s0] sm:$0xff]
    %v25 = vld [vmem:[%s0 + $0x8] sm:$0xff]
    %v26 = vld [vmem:[%s1] sm:$0xff]
    %v27 = vld [vmem:[%s1 + $0x8] sm:$0xff]
    %v28 = vld [vmem:[%s1 + $0x10] sm:$0xff]
    %v29 = vld [vmem:[%s1 + $0x18] sm:$0xff]
    %v30 = vld [vmem:[%s1 + $0x20] sm:$0xff]
    %v31 = vld [vmem:[%s1 + $0x28] sm:$0xff]
    %v32 = vld [vmem:[%s1 + $0x30] sm:$0xff]
    %v33 = vld [vmem:[%s1 + $0x38] sm:$0xff]
    %vm34 = vcmask 261120
    %v36 = vsel %vm34, %v24, 0
    %v39 = vsel %vm34, %v25, 0
    %v42 = vsel %vm34, %v26, 0
    %v45 = vsel %vm34, %v27, 0
    %v48 = vsel %vm34, %v28, 0
    %v51 = vsel %vm34, %v29, 0
    %v54 = vsel %vm34, %v30, 0
    %v57 = vsel %vm34, %v31, 0
    %v60 = vsel %vm34, %v32, 0
    %v63 = vsel %vm34, %v33, 0
    %65 = vmatprep.subr.mxu0 0.0
    %66 = vmatpush1.xpose.msra.mxu0 0.0
    %67 = vmatprep.subr.mxu0 0.0
    %68 = vmatpush1.xpose.msra.mxu0 0.0
    %69 = vmatprep.subr.mxu0 0.0
    %70 = vmatpush1.xpose.msra.mxu0 0.0
    %71 = vmatprep.subr.mxu0 0.0
    %72 = vmatpush1.xpose.msra.mxu0 0.0
    %73 = vmatprep.subr.mxu0 0.0
    %74 = vmatpush1.xpose.msra.mxu0 0.0
    %75 = vmatprep.subr.mxu0 0.0
    %76 = vmatpush1.xpose.msra.mxu0 0.0
    %77 = vmatprep.subr.mxu0 0.0
    %78 = vmatpush1.xpose.msra.mxu0 0.0
    %79 = vmatprep.subr.mxu0 0.0
    %80 = vmatpush1.xpose.msra.mxu0 0.0
    %81 = vmatprep.subr.mxu0 0.0
    %82 = vmatpush1.xpose.msra.mxu0 %v63
    %83 = vmatprep.subr.mxu0 0.0
    %84 = vmatpush1.xpose.msra.mxu0 %v60
    %85 = vmatprep.subr.mxu0 0.0
    %86 = vmatpush1.xpose.msra.mxu0 %v57
    %87 = vmatprep.subr.mxu0 0.0
    %88 = vmatpush1.xpose.msra.mxu0 %v54
    %89 = vmatprep.subr.mxu0 0.0
    %90 = vmatpush1.xpose.msra.mxu0 %v51
    %91 = vmatprep.subr.mxu0 0.0
    %92 = vmatpush1.xpose.msra.mxu0 %v48
    %93 = vmatprep.subr.mxu0 0.0
    %94 = vmatpush1.xpose.msra.mxu0 %v45
    %95 = vmatprep.subr.mxu0 0.0
    %96 = vmatpush1.xpose.msra.mxu0 %v42
    %97 = vmatprep.subr.mxu0 0.0
    %98 = vmatpush2.xpose.msra.mxu0 0.0
    %99 = vmatprep.subr.mxu0 0.0
    %100 = vmatpush2.xpose.msra.mxu0 0.0
    %101 = vmatprep.subr.mxu0 0.0
    %102 = vmatpush2.xpose.msra.mxu0 0.0
    %103 = vmatprep.subr.mxu0 0.0
    %104 = vmatpush2.xpose.msra.mxu0 0.0
    %105 = vmatprep.subr.mxu0 0.0
    %106 = vmatpush2.xpose.msra.mxu0 0.0
    %107 = vmatprep.subr.mxu0 0.0
    %108 = vmatpush2.xpose.msra.mxu0 0.0
    %109 = vmatprep.subr.mxu0 0.0
    %110 = vmatpush2.xpose.msra.mxu0 0.0
    %111 = vmatprep.subr.mxu0 0.0
    %112 = vmatpush2.xpose.msra.mxu0 0.0
    %113 = vmatprep.subr.mxu0 0.0
    %114 = vmatpush2.xpose.msra.mxu0 0.0
    %115 = vmatprep.subr.mxu0 0.0
    %116 = vmatpush2.xpose.msra.mxu0 0.0
    %117 = vmatprep.subr.mxu0 0.0
    %118 = vmatpush2.xpose.msra.mxu0 0.0
    %119 = vmatprep.subr.mxu0 0.0
    %120 = vmatpush2.xpose.msra.mxu0 0.0
    %121 = vmatprep.subr.mxu0 0.0
    %122 = vmatpush2.xpose.msra.mxu0 0.0
    %123 = vmatprep.subr.mxu0 0.0
    %124 = vmatpush2.xpose.msra.mxu0 0.0
    %125 = vmatprep.subr.mxu0 0.0
    %126 = vmatpush2.xpose.msra.mxu0 0.0
    %127 = vmatprep.subr.mxu0 0.0
    %128 = vmatpush2.xpose.msra.mxu0 0.0
    %129 = vmatprep.mubr.f32.mxu0 0.0
    %130 = vmatmul.mubr.f32.gmra.mxu0 %v36
    %v131 = vpop.f32.mrf.mxu0
    %v132 = vadd.f32 0.0, %v131
    %v133 = vpop.f32.mrf.mxu0
    %134 = vmatprep.mubr.f32.mxu0 0.0
    %135 = vmatmul.mubr.f32.gmra.mxu0 %v39
    %v136 = vpop.f32.mrf.mxu0
    %v137 = vadd.f32 0.0, %v136
    %v138 = vpop.f32.mrf.mxu0
    %139 = vdwg.mxu0
    %v140 = vadd.f32 %v22, %v132
    %v141 = vadd.f32 %v23, %v137
    %vm142 = vcmask 523264
    %143 = vst.msk [vmem:[#allocation2] sm:$0xff] %vm142, %v140
    %144 = vst.msk [vmem:[#allocation2 + $0x8] sm:$0xff] %vm142, %v141
    // Predicated region
    $region18: #{pallas_linear.1} parent=1 // pred_check
      %p145 = pneg %p15
    $region19: #{pallas_linear.1} parent=1 // pred_check_branch
      %147 = sbr.rel (%p145) target = $region21
    $region20: #{pallas_linear.1} parent=1 // pred_region
      %v148 = vld [vmem:[#allocation2] sm:$0xff]
      %v149 = vld [vmem:[#allocation2 + $0x8] sm:$0xff]
      %v150 = vld [vmem:[%s2] sm:$0x1]
      %v152 = vlaneseq
      %v153 = vshrl.u32 %v152, 7
      %v154 = vsub.s32 0, %v153
      %v155 = vrot.slane %v150, %v154
      %v157 = vadd.f32 %v148, %v155
      %v158 = vadd.f32 %v149, %v155
      %159 = vst.msk [vmem:[#allocation2] sm:$0xff] %vm142, %v157
      %160 = vst.msk [vmem:[#allocation2 + $0x8] sm:$0xff] %vm142, %v158
    $region21: #{pallas_linear.1} parent=1 // pred_fallthru
      _
    // Predicated region
    $region22: #{pallas_linear.1} parent=1 // pred_check
      _
    $region23: #{pallas_linear.1} parent=1 // pred_check_branch
      %162 = sbr.rel (0) target = $region25
    $region24: #{pallas_linear.1} parent=1 // pred_region
      %s164 = ssub.s32 256, 256
      %165 = vsyncadd [#allocation3], %s164
      %s166 = sshll.u32 [#allocation2], 4
      %s167 = int_to_ptr.vmem [resolvable:$true] %s166
      %172 = dma.vmem_to_hbm [thread:$0]  %s167, 256, %s3, [#allocation3], 128, 128, 8
    $region25: #{pallas_linear.1} parent=1 // pred_fallthru
      _
    // Predicated region
    $region26: #{pallas_linear.1} parent=1 // pred_check
      _
    $region27: #{pallas_linear.1} parent=1 // pred_check_branch
      %174 = sbr.rel (0) target = $region29
    $region28: #{pallas_linear.1} parent=1 // pred_region
      %175 = dma.done [#allocation3], 256
    $region29: #{pallas_linear.1} parent=1 // pred_fallthru
      _
    %176 = vsyncpa [#allocation3], 1

</llo_original>
